<compile_context>
chip_gen: v6e
topology: v6e:2x2x1
jax: 0.10.0
libtpu: 0.0.40
codegen_flags: <defaults>
</compile_context>

<pallas_src>
import functools

import jax
import jax.numpy as jnp
from jax.experimental import pallas as pl
from jax.experimental.pallas import tpu as pltpu


_NEG_INF = -1e30   # bias on padded class lanes; exp() underflows to exactly 0
_INT_MAX = 2**31 - 1


# --------------------------------------------------------------------------
# Kernels
# --------------------------------------------------------------------------
def _classifier_head(features, w_ref, b_ref, logits_ref, probs_ref, pred_ref,
                     approx_softmax):
    """Shared fc + softmax + argmax head. `features` is (tb, n_features)."""
    # nn.Linear: bf16 x bf16 -> f32 accumulate on the MXU.
    logits = (
        jnp.dot(features.astype(w_ref.dtype), w_ref[...],
                preferred_element_type=jnp.float32)
        + b_ref[...]
    )
    logits_ref[...] = logits

    # nn.Softmax(dim=1) over the padded lane width; padded lanes carry
    # logits ~= -1e30 so they contribute exactly 0 to the sum.
    m = jnp.max(logits, axis=1, keepdims=True)
    e = jnp.exp(logits - m)
    s = jnp.sum(e, axis=1, keepdims=True)
    if approx_softmax:
        probs_ref[...] = e * pl.reciprocal(s, approx=True)   # EUP slot
    else:
        probs_ref[...] = e / s

    # torch.argmax(probabilities, dim=1): softmax is monotonic, so argmax on
    # logits is identical (reuses the row max `m`; ties -> lowest index, same
    # as torch/jnp argmax). Broadcast across 128 lanes for a lane-dense store.
    idx = jax.lax.broadcasted_iota(jnp.int32, logits.shape, 1)
    pred = jnp.min(jnp.where(logits == m, idx, jnp.int32(_INT_MAX)),
                   axis=1, keepdims=True)
    pred_ref[...] = jnp.broadcast_to(pred, pred_ref.shape)


def _pool_classifier_kernel(approx_softmax, x_ref, w_ref, b_ref,
                            logits_ref, probs_ref, pred_ref):
    # x_ref: (tb, C, HW) -- HW on the lane axis. Sum with an f32 accumulator
    # (no materialized f32 copy of the block); the 1/HW mean scale is already
    # folded into w_ref by the wrapper.
    pooled = jnp.sum(x_ref[...], axis=-1, dtype=jnp.float32)     # (tb, C)
    _classifier_head(pooled, w_ref, b_ref, logits_ref, probs_ref, pred_ref,
                     approx_softmax)


def _flat_classifier_kernel(approx_softmax, x_ref, w_ref, b_ref,
                            logits_ref, probs_ref, pred_ref):
    # x_ref: (tb, n_features) -- already flat, no pooling / no relayout.
    _classifier_head(x_ref[...], w_ref, b_ref, logits_ref, probs_ref, pred_ref,
                     approx_softmax)


# --------------------------------------------------------------------------
# Tiling / VMEM budgeting
# --------------------------------------------------------------------------
def _vmem_budgets():
    """Return (input double-buffer budget, vmem_limit_bytes) per generation."""
    cap = None
    try:
        cap = getattr(pltpu.get_tpu_info(), "vmem_capacity_bytes", None)
    except Exception:
        cap = None
    if cap is None or cap <= (80 << 20):
        # v7x: 64 MiB per TensorCore -> stay conservative.
        return 12 << 20, 40 << 20
    # v5e / v6e: 128 MiB physical. v5e's default scoped limit is only 16 MiB,
    # so the explicit vmem_limit_bytes matters there; v6e benefits from the
    # bigger tile budget (closer to HBM roofline).
    return 32 << 20, 96 << 20


def _pick_batch_tile(batch, bytes_per_row, vmem_budget_bytes):
    """Largest 8-aligned batch tile whose double-buffered input fits budget,
    capped so batches bigger than one minimal tile keep >= 2 grid steps
    (pipelining overlap + v7x megacore sharding)."""
    tb = vmem_budget_bytes // (2 * max(1, bytes_per_row))
    tb = max(8, (tb // 8) * 8)
    if batch > 8:
        half = ((-(-batch // 2) + 7) // 8) * 8   # ceil(B/2) rounded up to 8
        tb = min(tb, max(8, half))
    else:
        tb = min(tb, 8)
    return tb


# --------------------------------------------------------------------------
# Wrapper
# --------------------------------------------------------------------------
def image_classifier(backbone_features, weight, bias, use_average_pooling=True,
                     approx_softmax=True):
    """JAX wrapper mirroring ImageClassifier.forward.

    backbone_features: (B, C, H, W) (NCHW, any float dtype; cast in-kernel)
    weight:            (num_classes, n_features)
    bias:              (num_classes,)
    Returns (logits, probabilities, class_prediction) with shapes
    (B, num_classes), (B, num_classes), (B,).
    """
    x = backbone_features
    B = x.shape[0]
    num_classes, n_features = weight.shape
    nc_pad = max(128, ((num_classes + 127) // 128) * 128)

    if use_average_pooling:
        _, C, H, W = x.shape
        assert C == n_features, "n_features must equal channel count"
        # TODO(synk): for backbones with H*W < 128 (e.g. 7x7 ResNet heads) a
        # channels-last (B, HW, C) layout (transpose pushed into the backbone)
        # is lane-denser; here H*W is a multiple of 128 so (B, C, HW) is dense.
        x_in = x.reshape(B, C, H * W)          # free contiguous reshape
        scale = 1.0 / float(H * W)             # fold mean scale into weight
        kernel = functools.partial(_pool_classifier_kernel, approx_softmax)
    else:
        x_in = x.reshape(B, n_features)        # 2-D: no size-1 lane axis
        scale = 1.0
        kernel = functools.partial(_flat_classifier_kernel, approx_softmax)

    # Weight: pre-transposed, mean-scale folded, class-padded, bf16 (f32 acc
    # in the MXU). Bias stays f32 and carries -1e30 on padded class lanes so
    # softmax / argmax over the padded width are exact.
    w_t = (
        jnp.zeros((n_features, nc_pad), jnp.bfloat16)
        .at[:, :num_classes]
        .set((weight.T * scale).astype(jnp.bfloat16))
    )
    b_pad = (
        jnp.full((1, nc_pad), _NEG_INF, jnp.float32)
        .at[0, :num_classes]
        .set(bias.astype(jnp.float32))
    )

    input_budget, vmem_limit = _vmem_budgets()
    row_elems = 1
    for d in x_in.shape[1:]:
        row_elems *= int(d)
    row_bytes = row_elems * x_in.dtype.itemsize

    tb = _pick_batch_tile(B, row_bytes, input_budget)
    b_padded = ((B + tb - 1) // tb) * tb
    if b_padded != B:
        pad_widths = [(0, b_padded - B)] + [(0, 0)] * (x_in.ndim - 1)
        x_in = jnp.pad(x_in, pad_widths)       # zero rows; sliced off below
    grid = (b_padded // tb,)

    def _call(single_buffer_invariants):
        inv_kwargs = (
            dict(pipeline_mode=pl.Buffered(1)) if single_buffer_invariants
            else {}
        )
        if use_average_pooling:
            x_spec = pl.BlockSpec((tb,) + x_in.shape[1:], lambda i: (i, 0, 0))
        else:
            x_spec = pl.BlockSpec((tb, n_features), lambda i: (i, 0))
        w_spec = pl.BlockSpec((n_features, nc_pad), lambda i: (0, 0),
                              **inv_kwargs)
        b_spec = pl.BlockSpec((1, nc_pad), lambda i: (0, 0), **inv_kwargs)

        return pl.pallas_call(
            kernel,
            grid=grid,
            in_specs=[x_spec, w_spec, b_spec],
            out_specs=(
                pl.BlockSpec((tb, nc_pad), lambda i: (i, 0)),
                pl.BlockSpec((tb, nc_pad), lambda i: (i, 0)),
                pl.BlockSpec((tb, 128), lambda i: (i, 0)),   # lane-dense pred
            ),
            out_shape=(
                jax.ShapeDtypeStruct((b_padded, nc_pad), jnp.float32),
                jax.ShapeDtypeStruct((b_padded, nc_pad), jnp.float32),
                jax.ShapeDtypeStruct((b_padded, 128), jnp.int32),
            ),
            compiler_params=pltpu.CompilerParams(
                dimension_semantics=("parallel",),
                vmem_limit_bytes=vmem_limit,
            ),
        )(x_in, w_t, b_pad)

    try:
        logits_p, probs_p, pred_p = _call(True)
    except Exception:
        # Fallback for jax versions where BlockSpec(pipeline_mode=Buffered(1))
        # is not supported for top-level pallas_call grids.
        logits_p, probs_p, pred_p = _call(False)

    logits = logits_p[:B, :num_classes]
    probs = probs_p[:B, :num_classes]
    class_prediction = pred_p[:B, 0]
    return logits, probs, class_prediction


# --------------------------------------------------------------------------
# Self-test
# --------------------------------------------------------------------------
if __name__ == "__main__":
    # Small shapes consistent with the module: NCHW features, n_features = C.
    B, C, H, W = 2, 4, 16, 16
    num_classes = 10

    key = jax.random.PRNGKey(0)
    kx, kw, kb, kw2, kb2 = jax.random.split(key, 5)

    x = jax.random.normal(kx, (B, C, H, W), dtype=jnp.float32)

    # --- path 1: use_average_pooling=True (n_features = C) -----------------
    n_features = C
    bound = 1.0 / (n_features ** 0.5)
    weight = jax.random.uniform(kw, (num_classes, n_features),
                                minval=-bound, maxval=bound, dtype=jnp.float32)
    bias = jax.random.uniform(kb, (num_classes,),
                              minval=-bound, maxval=bound, dtype=jnp.float32)

    logits, probs, preds = image_classifier(x, weight, bias,
                                            use_average_pooling=True)
    jax.block_until_ready((logits, probs, preds))

    pooled_ref = jnp.mean(x, axis=(2, 3))
    logits_ref = pooled_ref @ weight.T + bias
    probs_ref = jax.nn.softmax(logits_ref, axis=1)
    # bf16 weights + approx reciprocal -> compare with appropriately loose tol.
    assert jnp.allclose(logits, logits_ref, atol=1e-2), "logits mismatch (pool)"
    assert jnp.allclose(probs, probs_ref, atol=1e-2), "probs mismatch (pool)"
    # argmax must be exactly consistent with the returned logits.
    assert jnp.array_equal(
        preds.astype(jnp.int32),
        jnp.argmax(logits, axis=1).astype(jnp.int32)), "argmax mismatch (pool)"

    # --- path 2: use_average_pooling=False (n_features = C*H*W) ------------
    n_features2 = C * H * W
    bound2 = 1.0 / (n_features2 ** 0.5)
    weight2 = jax.random.uniform(kw2, (num_classes, n_features2),
                                 minval=-bound2, maxval=bound2,
                                 dtype=jnp.float32)
    bias2 = jax.random.uniform(kb2, (num_classes,),
                               minval=-bound2, maxval=bound2,
                               dtype=jnp.float32)

    logits2, probs2, preds2 = image_classifier(x, weight2, bias2,
                                               use_average_pooling=False)
    jax.block_until_ready((logits2, probs2, preds2))

    flat_ref = x.reshape(B, -1)
    logits2_ref = flat_ref @ weight2.T + bias2
    probs2_ref = jax.nn.softmax(logits2_ref, axis=1)
    assert jnp.allclose(logits2, logits2_ref, atol=2e-2), "logits mismatch (no-pool)"
    assert jnp.allclose(probs2, probs2_ref, atol=1e-2), "probs mismatch (no-pool)"
    assert jnp.array_equal(
        preds2.astype(jnp.int32),
        jnp.argmax(logits2, axis=1).astype(jnp.int32)), "argmax mismatch (no-pool)"

    print("KERNEL_OK")
</pallas_src>

<mosaic_0001>
module attributes {stable_mosaic.version = 11 : i64} {
  func.func @_pool_classifier_kernel(%arg0: i32, %arg1: memref<8x4x256xf32, #tpu.memory_space<vmem>>, %arg2: memref<4x128xbf16, #tpu.memory_space<vmem>>, %arg3: memref<1x128xf32, #tpu.memory_space<vmem>>, %arg4: memref<8x128xf32, #tpu.memory_space<vmem>>, %arg5: memref<8x128xf32, #tpu.memory_space<vmem>>, %arg6: memref<8x128xi32, #tpu.memory_space<vmem>>) attributes {dimension_semantics = [#tpu.dimension_semantics<parallel>], iteration_bounds = array<i64: 1>, scalar_prefetch = 0 : i64, scratch_operands = 0 : i64, tpu.core_type = #tpu.core_type<tc>, window_params = [{transform_indices = @transform_0, window_bounds = array<i64: 8, 4, 256>}, {pipeline_mode = #tpu.pipeline_mode<synchronous>, transform_indices = @transform_1, window_bounds = array<i64: 4, 128>}, {pipeline_mode = #tpu.pipeline_mode<synchronous>, transform_indices = @transform_2, window_bounds = array<i64: 1, 128>}, {transform_indices = @transform_3, window_bounds = array<i64: 8, 128>}, {transform_indices = @transform_4, window_bounds = array<i64: 8, 128>}, {transform_indices = @transform_5, window_bounds = array<i64: 8, 128>}]} {
    %c0 = arith.constant 0 : index
    %c0_0 = arith.constant 0 : index
    %c0_1 = arith.constant 0 : index
    %0 = vector.load %arg1[%c0, %c0_0, %c0_1] : memref<8x4x256xf32, #tpu.memory_space<vmem>>, vector<8x4x256xf32>
    %cst = arith.constant dense<0.000000e+00> : vector<8x4xf32>
    %1 = vector.multi_reduction <add>, %0, %cst [2] : vector<8x4x256xf32> to vector<8x4xf32>
    %2 = arith.truncf %1 : vector<8x4xf32> to vector<8x4xbf16>
    %c0_2 = arith.constant 0 : index
    %c0_3 = arith.constant 0 : index
    %3 = vector.load %arg2[%c0_2, %c0_3] : memref<4x128xbf16, #tpu.memory_space<vmem>>, vector<4x128xbf16>
    %cst_4 = arith.constant dense<0.000000e+00> : vector<8x128xf32>
    %4 = tpu.matmul %2, %3, %cst_4 {dimension_numbers = #tpu.dot_dimension_numbers<[1], [0], [0], [1], [0, 0, 1, 1], [], []>} : vector<8x4xbf16>, vector<4x128xbf16>, vector<8x128xf32> -> vector<8x128xf32>
    %c0_5 = arith.constant 0 : index
    %c0_6 = arith.constant 0 : index
    %5 = vector.load %arg3[%c0_5, %c0_6] : memref<1x128xf32, #tpu.memory_space<vmem>>, vector<1x128xf32>
    %6 = vector.broadcast %5 : vector<1x128xf32> to vector<8x128xf32>
    %7 = arith.addf %4, %6 : vector<8x128xf32>
    %c0_7 = arith.constant 0 : index
    %c0_8 = arith.constant 0 : index
    %8 = vector.load %arg4[%c0_7, %c0_8] : memref<8x128xf32, #tpu.memory_space<vmem>>, vector<8x128xf32>
    tpu.vector_store %arg4[%c0_7, %c0_8], %7 {strides = array<i32>} : memref<8x128xf32, #tpu.memory_space<vmem>>, vector<8x128xf32>,
    %cst_9 = arith.constant dense<0xFF800000> : vector<8xf32>
    %9 = vector.multi_reduction <maximumf>, %7, %cst_9 [1] : vector<8x128xf32> to vector<8xf32>
    %10 = vector.shape_cast %9 : vector<8xf32> to vector<8x1xf32>
    %11 = vector.broadcast %10 : vector<8x1xf32> to vector<8x128xf32>
    %12 = arith.subf %7, %11 : vector<8x128xf32>
    %13 = math.exp %12 : vector<8x128xf32>
    %cst_10 = arith.constant dense<0.000000e+00> : vector<8xf32>
    %14 = vector.multi_reduction <add>, %13, %cst_10 [1] : vector<8x128xf32> to vector<8xf32>
    %15 = vector.shape_cast %14 : vector<8xf32> to vector<8x1xf32>
    %16 = tpu.reciprocal %15 {approx = true} : vector<8x1xf32> -> vector<8x1xf32>
    %17 = vector.broadcast %16 : vector<8x1xf32> to vector<8x128xf32>
    %18 = arith.mulf %13, %17 : vector<8x128xf32>
    %c0_11 = arith.constant 0 : index
    %c0_12 = arith.constant 0 : index
    %19 = vector.load %arg5[%c0_11, %c0_12] : memref<8x128xf32, #tpu.memory_space<vmem>>, vector<8x128xf32>
    tpu.vector_store %arg5[%c0_11, %c0_12], %18 {strides = array<i32>} : memref<8x128xf32, #tpu.memory_space<vmem>>, vector<8x128xf32>,
    %20 = tpu.iota {dimensions = array<i32: 1>} : vector<8x128xi32>
    %21 = vector.broadcast %10 : vector<8x1xf32> to vector<8x128xf32>
    %22 = arith.cmpf oeq, %7, %21 : vector<8x128xf32>
    %c2147483647_i32 = arith.constant 2147483647 : i32
    %23 = vector.broadcast %c2147483647_i32 : i32 to vector<8x128xi32>
    %24 = arith.select %22, %20, %23 : vector<8x128xi1>, vector<8x128xi32>
    %cst_13 = arith.constant dense<2147483647> : vector<8xi32>
    %25 = vector.multi_reduction <minsi>, %24, %cst_13 [1] : vector<8x128xi32> to vector<8xi32>
    %26 = vector.shape_cast %25 : vector<8xi32> to vector<8x1xi32>
    %27 = vector.shape_cast %26 : vector<8x1xi32> to vector<8x1xi32>
    %28 = vector.broadcast %27 : vector<8x1xi32> to vector<8x128xi32>
    %c0_14 = arith.constant 0 : index
    %c0_15 = arith.constant 0 : index
    %29 = vector.load %arg6[%c0_14, %c0_15] : memref<8x128xi32, #tpu.memory_space<vmem>>, vector<8x128xi32>
    tpu.vector_store %arg6[%c0_14, %c0_15], %28 {strides = array<i32>} : memref<8x128xi32, #tpu.memory_space<vmem>>, vector<8x128xi32>,
    return
  }
  func.func @transform_0(%arg0: i32) -> (i32, i32, i32) {
    %c0_i32 = arith.constant 0 : i32
    %c0_i32_0 = arith.constant 0 : i32
    %c0_i32_1 = arith.constant 0 : i32
    return %arg0, %c0_i32, %c0_i32_0 : i32, i32, i32
  }
  func.func @transform_1(%arg0: i32) -> (i32, i32) {
    %c0_i32 = arith.constant 0 : i32
    %c0_i32_0 = arith.constant 0 : i32
    %c0_i32_1 = arith.constant 0 : i32
    return %c0_i32, %c0_i32_0 : i32, i32
  }
  func.func @transform_2(%arg0: i32) -> (i32, i32) {
    %c0_i32 = arith.constant 0 : i32
    %c0_i32_0 = arith.constant 0 : i32
    %c0_i32_1 = arith.constant 0 : i32
    return %c0_i32, %c0_i32_0 : i32, i32
  }
  func.func @transform_3(%arg0: i32) -> (i32, i32) {
    %c0_i32 = arith.constant 0 : i32
    %c0_i32_0 = arith.constant 0 : i32
    return %arg0, %c0_i32 : i32, i32
  }
  func.func @transform_4(%arg0: i32) -> (i32, i32) {
    %c0_i32 = arith.constant 0 : i32
    %c0_i32_0 = arith.constant 0 : i32
    return %arg0, %c0_i32 : i32, i32
  }
  func.func @transform_5(%arg0: i32) -> (i32, i32) {
    %c0_i32 = arith.constant 0 : i32
    %c0_i32_0 = arith.constant 0 : i32
    return %arg0, %c0_i32 : i32, i32
  }
}

module attributes {stable_mosaic.version = 11 : i64} {
  func.func @_pool_classifier_kernel(%arg0: i32, %arg1: memref<8x4x256xf32, #tpu.memory_space<vmem>>, %arg2: memref<4x128xbf16, #tpu.memory_space<vmem>>, %arg3: memref<1x128xf32, #tpu.memory_space<vmem>>, %arg4: memref<8x128xf32, #tpu.memory_space<vmem>>, %arg5: memref<8x128xf32, #tpu.memory_space<vmem>>, %arg6: memref<8x128xi32, #tpu.memory_space<vmem>>) attributes {dimension_semantics = [#tpu.dimension_semantics<parallel>], iteration_bounds = array<i64: 1>, scalar_prefetch = 0 : i64, scratch_operands = 0 : i64, tpu.core_type = #tpu.core_type<tc>, window_params = [{transform_indices = @transform_0, window_bounds = array<i64: 8, 4, 256>}, {pipeline_mode = #tpu.pipeline_mode<synchronous>, transform_indices = @transform_1, window_bounds = array<i64: 4, 128>}, {pipeline_mode = #tpu.pipeline_mode<synchronous>, transform_indices = @transform_2, window_bounds = array<i64: 1, 128>}, {transform_indices = @transform_3, window_bounds = array<i64: 8, 128>}, {transform_indices = @transform_4, window_bounds = array<i64: 8, 128>}, {transform_indices = @transform_5, window_bounds = array<i64: 8, 128>}]} {
    %c0 = arith.constant 0 : index
    %c0_0 = arith.constant 0 : index
    %c0_1 = arith.constant 0 : index
    %0 = vector.load %arg1[%c0, %c0_0, %c0_1] : memref<8x4x256xf32, #tpu.memory_space<vmem>>, vector<8x4x256xf32>
    %cst = arith.constant dense<0.000000e+00> : vector<8x4xf32>
    %1 = vector.multi_reduction <add>, %0, %cst [2] : vector<8x4x256xf32> to vector<8x4xf32>
    %2 = arith.truncf %1 : vector<8x4xf32> to vector<8x4xbf16>
    %c0_2 = arith.constant 0 : index
    %c0_3 = arith.constant 0 : index
    %3 = vector.load %arg2[%c0_2, %c0_3] : memref<4x128xbf16, #tpu.memory_space<vmem>>, vector<4x128xbf16>
    %cst_4 = arith.constant dense<0.000000e+00> : vector<8x128xf32>
    %4 = tpu.matmul %2, %3, %cst_4 {dimension_numbers = #tpu.dot_dimension_numbers<[1], [0], [0], [1], [0, 0, 1, 1], [], []>} : vector<8x4xbf16>, vector<4x128xbf16>, vector<8x128xf32> -> vector<8x128xf32>
    %c0_5 = arith.constant 0 : index
    %c0_6 = arith.constant 0 : index
    %5 = vector.load %arg3[%c0_5, %c0_6] : memref<1x128xf32, #tpu.memory_space<vmem>>, vector<1x128xf32>
    %6 = vector.broadcast %5 : vector<1x128xf32> to vector<8x128xf32>
    %7 = arith.addf %4, %6 : vector<8x128xf32>
    %c0_7 = arith.constant 0 : index
    %c0_8 = arith.constant 0 : index
    %8 = vector.load %arg4[%c0_7, %c0_8] : memref<8x128xf32, #tpu.memory_space<vmem>>, vector<8x128xf32>
    tpu.vector_store %arg4[%c0_7, %c0_8], %7 {strides = array<i32>} : memref<8x128xf32, #tpu.memory_space<vmem>>, vector<8x128xf32>,
    %cst_9 = arith.constant dense<0xFF800000> : vector<8xf32>
    %9 = vector.multi_reduction <maximumf>, %7, %cst_9 [1] : vector<8x128xf32> to vector<8xf32>
    %10 = vector.shape_cast %9 : vector<8xf32> to vector<8x1xf32>
    %11 = vector.broadcast %10 : vector<8x1xf32> to vector<8x128xf32>
    %12 = arith.subf %7, %11 : vector<8x128xf32>
    %13 = math.exp %12 : vector<8x128xf32>
    %cst_10 = arith.constant dense<0.000000e+00> : vector<8xf32>
    %14 = vector.multi_reduction <add>, %13, %cst_10 [1] : vector<8x128xf32> to vector<8xf32>
    %15 = vector.shape_cast %14 : vector<8xf32> to vector<8x1xf32>
    %16 = tpu.reciprocal %15 {approx = true} : vector<8x1xf32> -> vector<8x1xf32>
    %17 = vector.broadcast %16 : vector<8x1xf32> to vector<8x128xf32>
    %18 = arith.mulf %13, %17 : vector<8x128xf32>
    %c0_11 = arith.constant 0 : index
    %c0_12 = arith.constant 0 : index
    %19 = vector.load %arg5[%c0_11, %c0_12] : memref<8x128xf32, #tpu.memory_space<vmem>>, vector<8x128xf32>
    tpu.vector_store %arg5[%c0_11, %c0_12], %18 {strides = array<i32>} : memref<8x128xf32, #tpu.memory_space<vmem>>, vector<8x128xf32>,
    %20 = tpu.iota {dimensions = array<i32: 1>} : vector<8x128xi32>
    %21 = vector.broadcast %10 : vector<8x1xf32> to vector<8x128xf32>
    %22 = arith.cmpf oeq, %7, %21 : vector<8x128xf32>
    %c2147483647_i32 = arith.constant 2147483647 : i32
    %23 = vector.broadcast %c2147483647_i32 : i32 to vector<8x128xi32>
    %24 = arith.select %22, %20, %23 : vector<8x128xi1>, vector<8x128xi32>
    %cst_13 = arith.constant dense<2147483647> : vector<8xi32>
    %25 = vector.multi_reduction <minsi>, %24, %cst_13 [1] : vector<8x128xi32> to vector<8xi32>
    %26 = vector.shape_cast %25 : vector<8xi32> to vector<8x1xi32>
    %27 = vector.shape_cast %26 : vector<8x1xi32> to vector<8x1xi32>
    %28 = vector.broadcast %27 : vector<8x1xi32> to vector<8x128xi32>
    %c0_14 = arith.constant 0 : index
    %c0_15 = arith.constant 0 : index
    %29 = vector.load %arg6[%c0_14, %c0_15] : memref<8x128xi32, #tpu.memory_space<vmem>>, vector<8x128xi32>
    tpu.vector_store %arg6[%c0_14, %c0_15], %28 {strides = array<i32>} : memref<8x128xi32, #tpu.memory_space<vmem>>, vector<8x128xi32>,
    return
  }
  func.func @transform_0(%arg0: i32) -> (i32, i32, i32) {
    %c0_i32 = arith.constant 0 : i32
    %c0_i32_0 = arith.constant 0 : i32
    %c0_i32_1 = arith.constant 0 : i32
    return %arg0, %c0_i32, %c0_i32_0 : i32, i32, i32
  }
  func.func @transform_1(%arg0: i32) -> (i32, i32) {
    %c0_i32 = arith.constant 0 : i32
    %c0_i32_0 = arith.constant 0 : i32
    %c0_i32_1 = arith.constant 0 : i32
    return %c0_i32, %c0_i32_0 : i32, i32
  }
  func.func @transform_2(%arg0: i32) -> (i32, i32) {
    %c0_i32 = arith.constant 0 : i32
    %c0_i32_0 = arith.constant 0 : i32
    %c0_i32_1 = arith.constant 0 : i32
    return %c0_i32, %c0_i32_0 : i32, i32
  }
  func.func @transform_3(%arg0: i32) -> (i32, i32) {
    %c0_i32 = arith.constant 0 : i32
    %c0_i32_0 = arith.constant 0 : i32
    return %arg0, %c0_i32 : i32, i32
  }
  func.func @transform_4(%arg0: i32) -> (i32, i32) {
    %c0_i32 = arith.constant 0 : i32
    %c0_i32_0 = arith.constant 0 : i32
    return %arg0, %c0_i32 : i32, i32
  }
  func.func @transform_5(%arg0: i32) -> (i32, i32) {
    %c0_i32 = arith.constant 0 : i32
    %c0_i32_0 = arith.constant 0 : i32
    return %arg0, %c0_i32 : i32, i32
  }
}

</mosaic_0001>

<llo_original>
// kernel: tpu_custom_call.1
$region0: #{tpu_custom_call.1}
  #allocation0 [shape = 'u32[]', space=smem, size = 0x4, offset = 0x4, fixed_abs, tag = 'smem constant byte address 0x4 - core index']
  #allocation1 [shape = 'u32[144,128]{1,0:T(1,128)}', space=vmem, size = 0x12000, scoped, tag = 'internal scratch']
  %s0 = inlined_call_operand.hbm [shape: f32[8,4,256], index: 0, kind: input, shape index: {}]
  %s1 = inlined_call_operand.hbm [shape: bf16[4,128], index: 1, kind: input, shape index: {}]
  %s2 = inlined_call_operand.vmem [shape: f32[1,128], index: 2, kind: input, shape index: {}]
  %s3 = inlined_call_operand.hbm [shape: f32[8,128], index: 3, kind: output, shape index: {0}]
  %s4 = inlined_call_operand.hbm [shape: f32[8,128], index: 4, kind: output, shape index: {1}]
  %s5 = inlined_call_operand.hbm [shape: s32[8,128], index: 5, kind: output, shape index: {2}]
  %6 = xla_tuple %s3, %s4, %s5
  %s7 = sld [smem:[#allocation0]]
  $region46: #{tpu_custom_call.1} parent=0
    _
  %s9 = ssub.s32 1, %s7
  %s10 = scalar_select 0, %s9, %s7
  $region1: #{tpu_custom_call.1} parent=0
    #allocation2 [shape = 'u8[32768]{0}', space=vmem, size = 0x8000, scoped, tag = 'input window, operand 0, single buffered']
    #allocation3 [shape = 's32[1]{0}', space=sflag, size = 0x4, scoped, tag = 'scoped memory for tpu_custom_call.1']
    #allocation4 [shape = 's32[1]{0}', space=sflag, size = 0x4, scoped, tag = 'scoped memory for tpu_custom_call.1']
    #allocation5 [shape = 'u8[1024]{0}', space=vmem, size = 0x400, scoped, tag = 'input window, operand 1, single buffered']
    #allocation6 [shape = 's32[1]{0}', space=sflag, size = 0x4, scoped, tag = 'scoped memory for tpu_custom_call.1']
    #allocation7 [shape = 'u8[4096]{0}', space=vmem, size = 0x1000, scoped, tag = 'output window, operand 0, single buffered']
    #allocation8 [shape = 'u8[4096]{0}', space=vmem, size = 0x1000, scoped, tag = 'output window, operand 1, single buffered']
    #allocation9 [shape = 's32[1]{0}', space=sflag, size = 0x4, scoped, tag = 'scoped memory for tpu_custom_call.1']
    #allocation10 [shape = 'u8[4096]{0}', space=vmem, size = 0x1000, scoped, tag = 'output window, operand 2, single buffered']
    %11 = vsyncpa [#allocation3], 0
    %12 = vsyncpa [#allocation6], 0
    %13 = vsyncpa [#allocation4], 0
    %14 = vsyncpa [#allocation9], 0
    // Predicated region
    $region2: #{tpu_custom_call.1} parent=1 // pred_check
      _
    $region3: #{tpu_custom_call.1} parent=1 // pred_check_branch
      %16 = sbr.rel (0) target = $region5
    $region4: #{tpu_custom_call.1} parent=1 // pred_region
      %s18 = ssub.s32 1024, 1024
      %19 = vsyncadd [#allocation3], %s18
      %s20 = sshll.u32 [#allocation2], 4
      %s21 = int_to_ptr.vmem [resolvable:$true] %s20
      %26 = dma.hbm_to_vmem [thread:$0]  %s0, 1024, %s21, [#allocation3], 128, 128, 8
    $region5: #{tpu_custom_call.1} parent=1 // pred_fallthru
      _
    // Predicated region
    $region6: #{tpu_custom_call.1} parent=1 // pred_check
      _
    $region7: #{tpu_custom_call.1} parent=1 // pred_check_branch
      %28 = sbr.rel (0) target = $region9
    $region8: #{tpu_custom_call.1} parent=1 // pred_region
      %s30 = ssub.s32 32, 32
      %31 = vsyncadd [#allocation6], %s30
      %s33 = sshll.u32 [#allocation5], 4
      %s34 = int_to_ptr.vmem [resolvable:$true] %s33
      %36 = dma.hbm_to_vmem [thread:$0]  %s1, 32, %s34, [#allocation6]
    $region9: #{tpu_custom_call.1} parent=1 // pred_fallthru
      _
    // Predicated region
    $region10: #{tpu_custom_call.1} parent=1 // pred_check
      _
    $region11: #{tpu_custom_call.1} parent=1 // pred_check_branch
      %38 = sbr.rel (0) target = $region13
    $region12: #{tpu_custom_call.1} parent=1 // pred_region
      _
    $region13: #{tpu_custom_call.1} parent=1 // pred_fallthru
      _
    // Predicated region
    $region14: #{tpu_custom_call.1} parent=1 // pred_check
      _
    $region15: #{tpu_custom_call.1} parent=1 // pred_check_branch
      %40 = sbr.rel (0) target = $region17
    $region16: #{tpu_custom_call.1} parent=1 // pred_region
      %41 = dma.done [#allocation3], 1024
    $region17: #{tpu_custom_call.1} parent=1 // pred_fallthru
      _
    // Predicated region
    $region18: #{tpu_custom_call.1} parent=1 // pred_check
      _
    $region19: #{tpu_custom_call.1} parent=1 // pred_check_branch
      %43 = sbr.rel (0) target = $region21
    $region20: #{tpu_custom_call.1} parent=1 // pred_region
      %44 = dma.done [#allocation6], 32
    $region21: #{tpu_custom_call.1} parent=1 // pred_fallthru
      _
    %v46 = vld [vmem:[#allocation2] sm:$0xff]
    %v47 = vld [vmem:[#allocation2 + $0x8] sm:$0xff]
    %v48 = vld [vmem:[#allocation2 + $0x10] sm:$0xff]
    %v49 = vld [vmem:[#allocation2 + $0x18] sm:$0xff]
    %v50 = vld [vmem:[#allocation2 + $0x20] sm:$0xff]
    %v51 = vld [vmem:[#allocation2 + $0x28] sm:$0xff]
    %v52 = vld [vmem:[#allocation2 + $0x30] sm:$0xff]
    %v53 = vld [vmem:[#allocation2 + $0x38] sm:$0xff]
    %v62 = vcombine.high %v46, %v46
    %v63 = vcombine.high %v47, %v47
    %v64 = vcombine.high %v48, %v48
    %v65 = vcombine.high %v49, %v49
    %v66 = vcombine.high %v50, %v50
    %v67 = vcombine.high %v51, %v51
    %v68 = vcombine.high %v52, %v52
    %v69 = vcombine.high %v53, %v53
    %vm78 = vcmask 1043456
    %v79 = vsel %vm78, %v46, 0.0
    %v80 = vsel %vm78, %v62, 0.0
    %v81 = vadd.f32 %v79, %v80
    %82 = vadd.xlane.f32.xlu0 %v81
    %v83 = vpop.xlane.xlu0 %82
    %v84 = vsel %vm78, %v47, 0.0
    %v85 = vsel %vm78, %v63, 0.0
    %v86 = vadd.f32 %v84, %v85
    %87 = vadd.xlane.f32.xlu0 %v86
    %v88 = vpop.xlane.xlu0 %87
    %v89 = vsel %vm78, %v48, 0.0
    %v90 = vsel %vm78, %v64, 0.0
    %v91 = vadd.f32 %v89, %v90
    %92 = vadd.xlane.f32.xlu0 %v91
    %v93 = vpop.xlane.xlu0 %92
    %v94 = vsel %vm78, %v49, 0.0
    %v95 = vsel %vm78, %v65, 0.0
    %v96 = vadd.f32 %v94, %v95
    %97 = vadd.xlane.f32.xlu0 %v96
    %v98 = vpop.xlane.xlu0 %97
    %v99 = vsel %vm78, %v50, 0.0
    %v100 = vsel %vm78, %v66, 0.0
    %v101 = vadd.f32 %v99, %v100
    %102 = vadd.xlane.f32.xlu0 %v101
    %v103 = vpop.xlane.xlu0 %102
    %v104 = vsel %vm78, %v51, 0.0
    %v105 = vsel %vm78, %v67, 0.0
    %v106 = vadd.f32 %v104, %v105
    %107 = vadd.xlane.f32.xlu0 %v106
    %v108 = vpop.xlane.xlu0 %107
    %v109 = vsel %vm78, %v52, 0.0
    %v110 = vsel %vm78, %v68, 0.0
    %v111 = vadd.f32 %v109, %v110
    %112 = vadd.xlane.f32.xlu0 %v111
    %v113 = vpop.xlane.xlu0 %112
    %v114 = vsel %vm78, %v53, 0.0
    %v115 = vsel %vm78, %v69, 0.0
    %v116 = vadd.f32 %v114, %v115
    %117 = vadd.xlane.f32.xlu0 %v116
    %v118 = vpop.xlane.xlu0 %117
    %v119 = vpack.c.bf16 %v83, %v83
    %v120 = vpack.c.bf16 %v88, %v88
    %v121 = vpack.c.bf16 %v93, %v93
    %v122 = vpack.c.bf16 %v98, %v98
    %v123 = vpack.c.bf16 %v103, %v103
    %v124 = vpack.c.bf16 %v108, %v108
    %v125 = vpack.c.bf16 %v113, %v113
    %v126 = vpack.c.bf16 %v118, %v118
    %v127 = vld [vmem:[#allocation5] sm:$0x3]
    %v128 = vld [vmem:[%s2] sm:$0x1]
    %v130 = vlaneseq
    %v131 = vshrl.u32 %v130, 7
    %v132 = vsub.s32 0, %v131
    %v133 = vrot.slane %v128, %v132
    %v143 = vunpack.c.l.b16 %v119
    %v144 = vunpack.c.l.b16 %v120
    %v145 = vunpack.c.l.b16 %v121
    %v146 = vunpack.c.l.b16 %v122
    %v147 = vunpack.c.l.b16 %v123
    %v148 = vunpack.c.l.b16 %v124
    %v149 = vunpack.c.l.b16 %v125
    %v150 = vunpack.c.l.b16 %v126
    %v151 = vlaneseq
    %v152 = vand.u32 %v151, 127
    %v153 = vlaneseq
    %v154 = vshrl.u32 %v153, 7
    %v155 = vsub.s32 %v152, %v154
    %v156 = vrot.slane %v143, %v155
    %v157 = vlaneseq
    %v158 = vshrl.u32 %v157, 7
    %v159 = vsub.s32 %v152, %v158
    %v160 = vrot.slane %v144, %v159
    %v161 = vlaneseq
    %v162 = vshrl.u32 %v161, 7
    %v163 = vsub.s32 %v152, %v162
    %v164 = vrot.slane %v145, %v163
    %v165 = vlaneseq
    %v166 = vshrl.u32 %v165, 7
    %v167 = vsub.s32 %v152, %v166
    %v168 = vrot.slane %v146, %v167
    %v169 = vlaneseq
    %v170 = vshrl.u32 %v169, 7
    %v171 = vsub.s32 %v152, %v170
    %v172 = vrot.slane %v147, %v171
    %v173 = vlaneseq
    %v174 = vshrl.u32 %v173, 7
    %v175 = vsub.s32 %v152, %v174
    %v176 = vrot.slane %v148, %v175
    %v177 = vlaneseq
    %v178 = vshrl.u32 %v177, 7
    %v179 = vsub.s32 %v152, %v178
    %v180 = vrot.slane %v149, %v179
    %v181 = vlaneseq
    %v182 = vshrl.u32 %v181, 7
    %v183 = vsub.s32 %v152, %v182
    %v184 = vrot.slane %v150, %v183
    %vm185 = vcmask 1041409
    %v186 = vsel %vm185, %v160, %v156
    %vm187 = vcmask 1042434
    %v188 = vsel %vm187, %v164, %v186
    %vm189 = vcmask 1043459
    %v190 = vsel %vm189, %v168, %v188
    %vm191 = vcmask 1044484
    %v192 = vsel %vm191, %v172, %v190
    %vm193 = vcmask 1045509
    %v194 = vsel %vm193, %v176, %v192
    %vm195 = vcmask 1046534
    %v196 = vsel %vm195, %v180, %v194
    %vm197 = vcmask 1047559
    %v198 = vsel %vm197, %v184, %v196
    %v199 = vpack.c.b16 %v198, %v198
    %vm200 = vcmask 31744
    %v202 = vsel %vm200, %v199, 0
    %vm204 = vcmask 1041408
    %v206 = vsel %vm204, %v127, 0
    %208 = vmatprep.subr.bf16.mxu0 0
    %209 = vmatpush1.bf16.msra.mxu0 0
    %210 = vmatprep.subr.bf16.mxu0 0
    %211 = vmatpush1.bf16.msra.mxu0 0
    %212 = vmatprep.subr.bf16.mxu0 0
    %213 = vmatpush1.bf16.msra.mxu0 0
    %214 = vmatprep.subr.bf16.mxu0 0
    %215 = vmatpush1.bf16.msra.mxu0 0
    %216 = vmatprep.subr.bf16.mxu0 0
    %217 = vmatpush1.bf16.msra.mxu0 0
    %218 = vmatprep.subr.bf16.mxu0 0
    %219 = vmatpush1.bf16.msra.mxu0 0
    %220 = vmatprep.subr.bf16.mxu0 0
    %221 = vmatpush1.bf16.msra.mxu0 0
    %222 = vmatprep.subr.bf16.mxu0 0
    %223 = vmatpush1.bf16.msra.mxu0 %v206
    %224 = vmatprep.subr.bf16.mxu0 0
    %225 = vmatpush2.bf16.msra.mxu0 0
    %226 = vmatprep.subr.bf16.mxu0 0
    %227 = vmatpush2.bf16.msra.mxu0 0
    %228 = vmatprep.subr.bf16.mxu0 0
    %229 = vmatpush2.bf16.msra.mxu0 0
    %230 = vmatprep.subr.bf16.mxu0 0
    %231 = vmatpush2.bf16.msra.mxu0 0
    %232 = vmatprep.subr.bf16.mxu0 0
    %233 = vmatpush2.bf16.msra.mxu0 0
    %234 = vmatprep.subr.bf16.mxu0 0
    %235 = vmatpush2.bf16.msra.mxu0 0
    %236 = vmatprep.subr.bf16.mxu0 0
    %237 = vmatpush2.bf16.msra.mxu0 0
    %238 = vmatprep.subr.bf16.mxu0 0
    %239 = vmatpush2.bf16.msra.mxu0 0
    %240 = vmatprep.mubr.bf16.mxu0 0
    %241 = vmatmul.mubr.bf16.gmra.mxu0 %v202
    %v242 = vpop.f32.mrf.mxu0
    %v243 = vadd.f32 %v133, %v242
    %v244 = vpop.f32.mrf.mxu0
    %v245 = vpop.f32.mrf.mxu0
    %v246 = vpop.f32.mrf.mxu0
    %247 = vdwg.mxu0
    %248 = vst [vmem:[#allocation7] sm:$0xff] %v243
    %249 = vmax.xlane.f32.xlu0 %v243
    %v250 = vpop.xlane.xlu0 %249
    %v251 = vsub.f32 %v243, %v250
    %v252 = vmul.f32 %v251, 1.442695
    %v253 = vpow.pop %v252
    %254 = vadd.xlane.f32.xlu0 %v253
    %v255 = vpop.xlane.xlu0 %254
    %v256 = vrcp.pop %v255
    %v257 = vmul.f32 %v253, %v256
    %258 = vst [vmem:[#allocation8] sm:$0xff] %v257
    %vm259 = vcmp.eq.f32.partialorder %v243, %v250
    %v260 = vsel %vm259, %v152, 2147483647
    %v261 = vand.u32 %v260, 65535
    %v262 = vshra.s32 %v260, 16
    %v263 = vcvt.s32.f32 %v261
    %v264 = vcvt.s32.f32 %v262
    %265 = vmin.xlane.f32.xlu0 %v264
    %v266 = vpop.xlane.xlu0 %265
    %vm267 = vcmp.eq.f32.partialorder %v264, %v266
    %v268 = vsel %vm267, %v263, inf
    %269 = vmin.xlane.f32.xlu0 %v268
    %v270 = vpop.xlane.xlu0 %269
    %v271 = vcvt.f32.s32 %v270
    %v272 = vcvt.f32.s32 %v266
    %v273 = vshll.u32 %v272, 16
    %v274 = vadd.s32 %v273, %v271
    %275 = vst [vmem:[#allocation10] sm:$0xff] %v274
    // Predicated region
    $region22: #{tpu_custom_call.1} parent=1 // pred_check
      _
    $region23: #{tpu_custom_call.1} parent=1 // pred_check_branch
      %277 = sbr.rel (0) target = $region25
    $region24: #{tpu_custom_call.1} parent=1 // pred_region
      %s279 = ssub.s32 128, 128
      %280 = vsyncadd [#allocation4], %s279
      %s282 = sshll.u32 [#allocation7], 4
      %s283 = int_to_ptr.vmem [resolvable:$true] %s282
      %285 = dma.vmem_to_hbm [thread:$0]  %s283, 128, %s3, [#allocation4]
    $region25: #{tpu_custom_call.1} parent=1 // pred_fallthru
      _
    // Predicated region
    $region26: #{tpu_custom_call.1} parent=1 // pred_check
      _
    $region27: #{tpu_custom_call.1} parent=1 // pred_check_branch
      %287 = sbr.rel (0) target = $region29
    $region28: #{tpu_custom_call.1} parent=1 // pred_region
      %s289 = ssub.s32 128, 128
      %290 = vsyncadd [#allocation9], %s289
      %s292 = sshll.u32 [#allocation8], 4
      %s293 = int_to_ptr.vmem [resolvable:$true] %s292
      %295 = dma.vmem_to_hbm [thread:$0]  %s293, 128, %s4, [#allocation9]
    $region29: #{tpu_custom_call.1} parent=1 // pred_fallthru
      _
    // Predicated region
    $region30: #{tpu_custom_call.1} parent=1 // pred_check
      _
    $region31: #{tpu_custom_call.1} parent=1 // pred_check_branch
      %297 = sbr.rel (0) target = $region33
    $region32: #{tpu_custom_call.1} parent=1 // pred_region
      %s299 = ssub.s32 128, 128
      %300 = vsyncadd [#allocation9], %s299
      %s302 = sshll.u32 [#allocation10], 4
      %s303 = int_to_ptr.vmem [resolvable:$true] %s302
      %305 = dma.vmem_to_hbm [thread:$0]  %s303, 128, %s5, [#allocation9]
    $region33: #{tpu_custom_call.1} parent=1 // pred_fallthru
      _
    // Predicated region
    $region34: #{tpu_custom_call.1} parent=1 // pred_check
      _
    $region35: #{tpu_custom_call.1} parent=1 // pred_check_branch
      %307 = sbr.rel (0) target = $region37
    $region36: #{tpu_custom_call.1} parent=1 // pred_region
      %308 = dma.done [#allocation4], 128
    $region37: #{tpu_custom_call.1} parent=1 // pred_fallthru
      _
    // Predicated region
    $region38: #{tpu_custom_call.1} parent=1 // pred_check
      _
    $region39: #{tpu_custom_call.1} parent=1 // pred_check_branch
      %310 = sbr.rel (0) target = $region41
    $region40: #{tpu_custom_call.1} parent=1 // pred_region
      %311 = dma.done [#allocation9], 128
    $region41: #{tpu_custom_call.1} parent=1 // pred_fallthru
      _
    // Predicated region
    $region42: #{tpu_custom_call.1} parent=1 // pred_check
      _
    $region43: #{tpu_custom_call.1} parent=1 // pred_check_branch
      %313 = sbr.rel (0) target = $region45
    $region44: #{tpu_custom_call.1} parent=1 // pred_region
      %314 = dma.done [#allocation9], 128
    $region45: #{tpu_custom_call.1} parent=1 // pred_fallthru
      _
    %315 = vsyncpa [#allocation3], 1
    %316 = vsyncpa [#allocation6], 1
    %317 = vsyncpa [#allocation4], 1
    %318 = vsyncpa [#allocation9], 1

// kernel: tpu_custom_call.1
$region0: #{tpu_custom_call.1}
  #allocation0 [shape = 'u32[]', space=smem, size = 0x4, offset = 0x4, fixed_abs, tag = 'smem constant byte address 0x4 - core index']
  #allocation1 [shape = 'u32[144,128]{1,0:T(1,128)}', space=vmem, size = 0x12000, scoped, tag = 'internal scratch']
  %s0 = inlined_call_operand.hbm [shape: f32[8,4,256], index: 0, kind: input, shape index: {}]
  %s1 = inlined_call_operand.hbm [shape: bf16[4,128], index: 1, kind: input, shape index: {}]
  %s2 = inlined_call_operand.vmem [shape: f32[1,128], index: 2, kind: input, shape index: {}]
  %s3 = inlined_call_operand.hbm [shape: f32[8,128], index: 3, kind: output, shape index: {0}]
  %s4 = inlined_call_operand.hbm [shape: f32[8,128], index: 4, kind: output, shape index: {1}]
  %s5 = inlined_call_operand.hbm [shape: s32[8,128], index: 5, kind: output, shape index: {2}]
  %6 = xla_tuple %s3, %s4, %s5
  %s7 = sld [smem:[#allocation0]]
  $region46: #{tpu_custom_call.1} parent=0
    _
  %s9 = ssub.s32 1, %s7
  %s10 = scalar_select 0, %s9, %s7
  $region1: #{tpu_custom_call.1} parent=0
    #allocation2 [shape = 'u8[32768]{0}', space=vmem, size = 0x8000, scoped, tag = 'input window, operand 0, single buffered']
    #allocation3 [shape = 's32[1]{0}', space=sflag, size = 0x4, scoped, tag = 'scoped memory for tpu_custom_call.1']
    #allocation4 [shape = 's32[1]{0}', space=sflag, size = 0x4, scoped, tag = 'scoped memory for tpu_custom_call.1']
    #allocation5 [shape = 'u8[1024]{0}', space=vmem, size = 0x400, scoped, tag = 'input window, operand 1, single buffered']
    #allocation6 [shape = 's32[1]{0}', space=sflag, size = 0x4, scoped, tag = 'scoped memory for tpu_custom_call.1']
    #allocation7 [shape = 'u8[4096]{0}', space=vmem, size = 0x1000, scoped, tag = 'output window, operand 0, single buffered']
    #allocation8 [shape = 'u8[4096]{0}', space=vmem, size = 0x1000, scoped, tag = 'output window, operand 1, single buffered']
    #allocation9 [shape = 's32[1]{0}', space=sflag, size = 0x4, scoped, tag = 'scoped memory for tpu_custom_call.1']
    #allocation10 [shape = 'u8[4096]{0}', space=vmem, size = 0x1000, scoped, tag = 'output window, operand 2, single buffered']
    %11 = vsyncpa [#allocation3], 0
    %12 = vsyncpa [#allocation6], 0
    %13 = vsyncpa [#allocation4], 0
    %14 = vsyncpa [#allocation9], 0
    // Predicated region
    $region2: #{tpu_custom_call.1} parent=1 // pred_check
      _
    $region3: #{tpu_custom_call.1} parent=1 // pred_check_branch
      %16 = sbr.rel (0) target = $region5
    $region4: #{tpu_custom_call.1} parent=1 // pred_region
      %s18 = ssub.s32 1024, 1024
      %19 = vsyncadd [#allocation3], %s18
      %s20 = sshll.u32 [#allocation2], 4
      %s21 = int_to_ptr.vmem [resolvable:$true] %s20
      %26 = dma.hbm_to_vmem [thread:$0]  %s0, 1024, %s21, [#allocation3], 128, 128, 8
    $region5: #{tpu_custom_call.1} parent=1 // pred_fallthru
      _
    // Predicated region
    $region6: #{tpu_custom_call.1} parent=1 // pred_check
      _
    $region7: #{tpu_custom_call.1} parent=1 // pred_check_branch
      %28 = sbr.rel (0) target = $region9
    $region8: #{tpu_custom_call.1} parent=1 // pred_region
      %s30 = ssub.s32 32, 32
      %31 = vsyncadd [#allocation6], %s30
      %s33 = sshll.u32 [#allocation5], 4
      %s34 = int_to_ptr.vmem [resolvable:$true] %s33
      %36 = dma.hbm_to_vmem [thread:$0]  %s1, 32, %s34, [#allocation6]
    $region9: #{tpu_custom_call.1} parent=1 // pred_fallthru
      _
    // Predicated region
    $region10: #{tpu_custom_call.1} parent=1 // pred_check
      _
    $region11: #{tpu_custom_call.1} parent=1 // pred_check_branch
      %38 = sbr.rel (0) target = $region13
    $region12: #{tpu_custom_call.1} parent=1 // pred_region
      _
    $region13: #{tpu_custom_call.1} parent=1 // pred_fallthru
      _
    // Predicated region
    $region14: #{tpu_custom_call.1} parent=1 // pred_check
      _
    $region15: #{tpu_custom_call.1} parent=1 // pred_check_branch
      %40 = sbr.rel (0) target = $region17
    $region16: #{tpu_custom_call.1} parent=1 // pred_region
      %41 = dma.done [#allocation3], 1024
    $region17: #{tpu_custom_call.1} parent=1 // pred_fallthru
      _
    // Predicated region
    $region18: #{tpu_custom_call.1} parent=1 // pred_check
      _
    $region19: #{tpu_custom_call.1} parent=1 // pred_check_branch
      %43 = sbr.rel (0) target = $region21
    $region20: #{tpu_custom_call.1} parent=1 // pred_region
      %44 = dma.done [#allocation6], 32
    $region21: #{tpu_custom_call.1} parent=1 // pred_fallthru
      _
    %v46 = vld [vmem:[#allocation2] sm:$0xff]
    %v47 = vld [vmem:[#allocation2 + $0x8] sm:$0xff]
    %v48 = vld [vmem:[#allocation2 + $0x10] sm:$0xff]
    %v49 = vld [vmem:[#allocation2 + $0x18] sm:$0xff]
    %v50 = vld [vmem:[#allocation2 + $0x20] sm:$0xff]
    %v51 = vld [vmem:[#allocation2 + $0x28] sm:$0xff]
    %v52 = vld [vmem:[#allocation2 + $0x30] sm:$0xff]
    %v53 = vld [vmem:[#allocation2 + $0x38] sm:$0xff]
    %v62 = vcombine.high %v46, %v46
    %v63 = vcombine.high %v47, %v47
    %v64 = vcombine.high %v48, %v48
    %v65 = vcombine.high %v49, %v49
    %v66 = vcombine.high %v50, %v50
    %v67 = vcombine.high %v51, %v51
    %v68 = vcombine.high %v52, %v52
    %v69 = vcombine.high %v53, %v53
    %vm78 = vcmask 1043456
    %v79 = vsel %vm78, %v46, 0.0
    %v80 = vsel %vm78, %v62, 0.0
    %v81 = vadd.f32 %v79, %v80
    %82 = vadd.xlane.f32.xlu0 %v81
    %v83 = vpop.xlane.xlu0 %82
    %v84 = vsel %vm78, %v47, 0.0
    %v85 = vsel %vm78, %v63, 0.0
    %v86 = vadd.f32 %v84, %v85
    %87 = vadd.xlane.f32.xlu0 %v86
    %v88 = vpop.xlane.xlu0 %87
    %v89 = vsel %vm78, %v48, 0.0
    %v90 = vsel %vm78, %v64, 0.0
    %v91 = vadd.f32 %v89, %v90
    %92 = vadd.xlane.f32.xlu0 %v91
    %v93 = vpop.xlane.xlu0 %92
    %v94 = vsel %vm78, %v49, 0.0
    %v95 = vsel %vm78, %v65, 0.0
    %v96 = vadd.f32 %v94, %v95
    %97 = vadd.xlane.f32.xlu0 %v96
    %v98 = vpop.xlane.xlu0 %97
    %v99 = vsel %vm78, %v50, 0.0
    %v100 = vsel %vm78, %v66, 0.0
    %v101 = vadd.f32 %v99, %v100
    %102 = vadd.xlane.f32.xlu0 %v101
    %v103 = vpop.xlane.xlu0 %102
    %v104 = vsel %vm78, %v51, 0.0
    %v105 = vsel %vm78, %v67, 0.0
    %v106 = vadd.f32 %v104, %v105
    %107 = vadd.xlane.f32.xlu0 %v106
    %v108 = vpop.xlane.xlu0 %107
    %v109 = vsel %vm78, %v52, 0.0
    %v110 = vsel %vm78, %v68, 0.0
    %v111 = vadd.f32 %v109, %v110
    %112 = vadd.xlane.f32.xlu0 %v111
    %v113 = vpop.xlane.xlu0 %112
    %v114 = vsel %vm78, %v53, 0.0
    %v115 = vsel %vm78, %v69, 0.0
    %v116 = vadd.f32 %v114, %v115
    %117 = vadd.xlane.f32.xlu0 %v116
    %v118 = vpop.xlane.xlu0 %117
    %v119 = vpack.c.bf16 %v83, %v83
    %v120 = vpack.c.bf16 %v88, %v88
    %v121 = vpack.c.bf16 %v93, %v93
    %v122 = vpack.c.bf16 %v98, %v98
    %v123 = vpack.c.bf16 %v103, %v103
    %v124 = vpack.c.bf16 %v108, %v108
    %v125 = vpack.c.bf16 %v113, %v113
    %v126 = vpack.c.bf16 %v118, %v118
    %v127 = vld [vmem:[#allocation5] sm:$0x3]
    %v128 = vld [vmem:[%s2] sm:$0x1]
    %v130 = vlaneseq
    %v131 = vshrl.u32 %v130, 7
    %v132 = vsub.s32 0, %v131
    %v133 = vrot.slane %v128, %v132
    %v143 = vunpack.c.l.b16 %v119
    %v144 = vunpack.c.l.b16 %v120
    %v145 = vunpack.c.l.b16 %v121
    %v146 = vunpack.c.l.b16 %v122
    %v147 = vunpack.c.l.b16 %v123
    %v148 = vunpack.c.l.b16 %v124
    %v149 = vunpack.c.l.b16 %v125
    %v150 = vunpack.c.l.b16 %v126
    %v151 = vlaneseq
    %v152 = vand.u32 %v151, 127
    %v153 = vlaneseq
    %v154 = vshrl.u32 %v153, 7
    %v155 = vsub.s32 %v152, %v154
    %v156 = vrot.slane %v143, %v155
    %v157 = vlaneseq
    %v158 = vshrl.u32 %v157, 7
    %v159 = vsub.s32 %v152, %v158
    %v160 = vrot.slane %v144, %v159
    %v161 = vlaneseq
    %v162 = vshrl.u32 %v161, 7
    %v163 = vsub.s32 %v152, %v162
    %v164 = vrot.slane %v145, %v163
    %v165 = vlaneseq
    %v166 = vshrl.u32 %v165, 7
    %v167 = vsub.s32 %v152, %v166
    %v168 = vrot.slane %v146, %v167
    %v169 = vlaneseq
    %v170 = vshrl.u32 %v169, 7
    %v171 = vsub.s32 %v152, %v170
    %v172 = vrot.slane %v147, %v171
    %v173 = vlaneseq
    %v174 = vshrl.u32 %v173, 7
    %v175 = vsub.s32 %v152, %v174
    %v176 = vrot.slane %v148, %v175
    %v177 = vlaneseq
    %v178 = vshrl.u32 %v177, 7
    %v179 = vsub.s32 %v152, %v178
    %v180 = vrot.slane %v149, %v179
    %v181 = vlaneseq
    %v182 = vshrl.u32 %v181, 7
    %v183 = vsub.s32 %v152, %v182
    %v184 = vrot.slane %v150, %v183
    %vm185 = vcmask 1041409
    %v186 = vsel %vm185, %v160, %v156
    %vm187 = vcmask 1042434
    %v188 = vsel %vm187, %v164, %v186
    %vm189 = vcmask 1043459
    %v190 = vsel %vm189, %v168, %v188
    %vm191 = vcmask 1044484
    %v192 = vsel %vm191, %v172, %v190
    %vm193 = vcmask 1045509
    %v194 = vsel %vm193, %v176, %v192
    %vm195 = vcmask 1046534
    %v196 = vsel %vm195, %v180, %v194
    %vm197 = vcmask 1047559
    %v198 = vsel %vm197, %v184, %v196
    %v199 = vpack.c.b16 %v198, %v198
    %vm200 = vcmask 31744
    %v202 = vsel %vm200, %v199, 0
    %vm204 = vcmask 1041408
    %v206 = vsel %vm204, %v127, 0
    %208 = vmatprep.subr.bf16.mxu0 0
    %209 = vmatpush1.bf16.msra.mxu0 0
    %210 = vmatprep.subr.bf16.mxu0 0
    %211 = vmatpush1.bf16.msra.mxu0 0
    %212 = vmatprep.subr.bf16.mxu0 0
    %213 = vmatpush1.bf16.msra.mxu0 0
    %214 = vmatprep.subr.bf16.mxu0 0
    %215 = vmatpush1.bf16.msra.mxu0 0
    %216 = vmatprep.subr.bf16.mxu0 0
    %217 = vmatpush1.bf16.msra.mxu0 0
    %218 = vmatprep.subr.bf16.mxu0 0
    %219 = vmatpush1.bf16.msra.mxu0 0
    %220 = vmatprep.subr.bf16.mxu0 0
    %221 = vmatpush1.bf16.msra.mxu0 0
    %222 = vmatprep.subr.bf16.mxu0 0
    %223 = vmatpush1.bf16.msra.mxu0 %v206
    %224 = vmatprep.subr.bf16.mxu0 0
    %225 = vmatpush2.bf16.msra.mxu0 0
    %226 = vmatprep.subr.bf16.mxu0 0
    %227 = vmatpush2.bf16.msra.mxu0 0
    %228 = vmatprep.subr.bf16.mxu0 0
    %229 = vmatpush2.bf16.msra.mxu0 0
    %230 = vmatprep.subr.bf16.mxu0 0
    %231 = vmatpush2.bf16.msra.mxu0 0
    %232 = vmatprep.subr.bf16.mxu0 0
    %233 = vmatpush2.bf16.msra.mxu0 0
    %234 = vmatprep.subr.bf16.mxu0 0
    %235 = vmatpush2.bf16.msra.mxu0 0
    %236 = vmatprep.subr.bf16.mxu0 0
    %237 = vmatpush2.bf16.msra.mxu0 0
    %238 = vmatprep.subr.bf16.mxu0 0
    %239 = vmatpush2.bf16.msra.mxu0 0
    %240 = vmatprep.mubr.bf16.mxu0 0
    %241 = vmatmul.mubr.bf16.gmra.mxu0 %v202
    %v242 = vpop.f32.mrf.mxu0
    %v243 = vadd.f32 %v133, %v242
    %v244 = vpop.f32.mrf.mxu0
    %v245 = vpop.f32.mrf.mxu0
    %v246 = vpop.f32.mrf.mxu0
    %247 = vdwg.mxu0
    %248 = vst [vmem:[#allocation7] sm:$0xff] %v243
    %249 = vmax.xlane.f32.xlu0 %v243
    %v250 = vpop.xlane.xlu0 %249
    %v251 = vsub.f32 %v243, %v250
    %v252 = vmul.f32 %v251, 1.442695
    %v253 = vpow.pop %v252
    %254 = vadd.xlane.f32.xlu0 %v253
    %v255 = vpop.xlane.xlu0 %254
    %v256 = vrcp.pop %v255
    %v257 = vmul.f32 %v253, %v256
    %258 = vst [vmem:[#allocation8] sm:$0xff] %v257
    %vm259 = vcmp.eq.f32.partialorder %v243, %v250
    %v260 = vsel %vm259, %v152, 2147483647
    %v261 = vand.u32 %v260, 65535
    %v262 = vshra.s32 %v260, 16
    %v263 = vcvt.s32.f32 %v261
    %v264 = vcvt.s32.f32 %v262
    %265 = vmin.xlane.f32.xlu0 %v264
    %v266 = vpop.xlane.xlu0 %265
    %vm267 = vcmp.eq.f32.partialorder %v264, %v266
    %v268 = vsel %vm267, %v263, inf
    %269 = vmin.xlane.f32.xlu0 %v268
    %v270 = vpop.xlane.xlu0 %269
    %v271 = vcvt.f32.s32 %v270
    %v272 = vcvt.f32.s32 %v266
    %v273 = vshll.u32 %v272, 16
    %v274 = vadd.s32 %v273, %v271
    %275 = vst [vmem:[#allocation10] sm:$0xff] %v274
    // Predicated region
    $region22: #{tpu_custom_call.1} parent=1 // pred_check
      _
    $region23: #{tpu_custom_call.1} parent=1 // pred_check_branch
      %277 = sbr.rel (0) target = $region25
    $region24: #{tpu_custom_call.1} parent=1 // pred_region
      %s279 = ssub.s32 128, 128
      %280 = vsyncadd [#allocation4], %s279
      %s282 = sshll.u32 [#allocation7], 4
      %s283 = int_to_ptr.vmem [resolvable:$true] %s282
      %285 = dma.vmem_to_hbm [thread:$0]  %s283, 128, %s3, [#allocation4]
    $region25: #{tpu_custom_call.1} parent=1 // pred_fallthru
      _
    // Predicated region
    $region26: #{tpu_custom_call.1} parent=1 // pred_check
      _
    $region27: #{tpu_custom_call.1} parent=1 // pred_check_branch
      %287 = sbr.rel (0) target = $region29
    $region28: #{tpu_custom_call.1} parent=1 // pred_region
      %s289 = ssub.s32 128, 128
      %290 = vsyncadd [#allocation9], %s289
      %s292 = sshll.u32 [#allocation8], 4
      %s293 = int_to_ptr.vmem [resolvable:$true] %s292
      %295 = dma.vmem_to_hbm [thread:$0]  %s293, 128, %s4, [#allocation9]
    $region29: #{tpu_custom_call.1} parent=1 // pred_fallthru
      _
    // Predicated region
    $region30: #{tpu_custom_call.1} parent=1 // pred_check
      _
    $region31: #{tpu_custom_call.1} parent=1 // pred_check_branch
      %297 = sbr.rel (0) target = $region33
    $region32: #{tpu_custom_call.1} parent=1 // pred_region
      %s299 = ssub.s32 128, 128
      %300 = vsyncadd [#allocation9], %s299
      %s302 = sshll.u32 [#allocation10], 4
      %s303 = int_to_ptr.vmem [resolvable:$true] %s302
      %305 = dma.vmem_to_hbm [thread:$0]  %s303, 128, %s5, [#allocation9]
    $region33: #{tpu_custom_call.1} parent=1 // pred_fallthru
      _
    // Predicated region
    $region34: #{tpu_custom_call.1} parent=1 // pred_check
      _
    $region35: #{tpu_custom_call.1} parent=1 // pred_check_branch
      %307 = sbr.rel (0) target = $region37
    $region36: #{tpu_custom_call.1} parent=1 // pred_region
      %308 = dma.done [#allocation4], 128
    $region37: #{tpu_custom_call.1} parent=1 // pred_fallthru
      _
    // Predicated region
    $region38: #{tpu_custom_call.1} parent=1 // pred_check
      _
    $region39: #{tpu_custom_call.1} parent=1 // pred_check_branch
      %310 = sbr.rel (0) target = $region41
    $region40: #{tpu_custom_call.1} parent=1 // pred_region
      %311 = dma.done [#allocation9], 128
    $region41: #{tpu_custom_call.1} parent=1 // pred_fallthru
      _
    // Predicated region
    $region42: #{tpu_custom_call.1} parent=1 // pred_check
      _
    $region43: #{tpu_custom_call.1} parent=1 // pred_check_branch
      %313 = sbr.rel (0) target = $region45
    $region44: #{tpu_custom_call.1} parent=1 // pred_region
      %314 = dma.done [#allocation9], 128
    $region45: #{tpu_custom_call.1} parent=1 // pred_fallthru
      _
    %315 = vsyncpa [#allocation3], 1
    %316 = vsyncpa [#allocation6], 1
    %317 = vsyncpa [#allocation4], 1
    %318 = vsyncpa [#allocation9], 1

</llo_original>
